<compile_context>
chip_gen: v7x
topology: tpu7x:2x2x1
jax: 0.10.0
libtpu: 0.0.40
codegen_flags: <defaults>
</compile_context>

<pallas_src>
import functools

import jax
import jax.numpy as jnp
from jax import lax
from jax.experimental import pallas as pl
from jax.experimental.pallas import tpu as pltpu


def _round_up(x, m):
    return (x + m - 1) // m * m


# ----------------------------------------------------------------------------
# Fast path: full centers table resident in VMEM, batched (TB, D) tiles of x.
# ----------------------------------------------------------------------------
def _center_loss_kernel_resident(labels_ref, x_ref, c_ref, out_ref,
                                 acc_ref, gath_ref, *,
                                 batch_size, num_classes, tile_b):
    # labels_ref: (B_pad,) i32 SMEM -- scalar prefetch (read for in-kernel gather)
    # x_ref:      (TB, D)  f32 VMEM -- batch tile t of x
    # c_ref:      (C,  D)  f32 VMEM -- full centers table (constant block index)
    # out_ref:    (1, 1)   f32 SMEM -- scalar loss output
    # acc_ref:    (1,)     f32 SMEM -- running sum over batch tiles
    # gath_ref:   (TB, D)  f32 VMEM -- centers rows gathered for this tile
    t = pl.program_id(0)

    @pl.when(t == 0)
    def _init():
        acc_ref[0] = jnp.float32(0.0)

    # Gather centers[labels[row]] for every row of this tile from the resident
    # table (one dynamic-sublane load + store per row; pure ld/st work).
    def _gather(r, carry):
        lbl = labels_ref[t * tile_b + r]
        gath_ref[pl.ds(r, 1), :] = c_ref[pl.ds(lbl, 1), :]
        return carry

    lax.fori_loop(0, tile_b, _gather, 0, unroll=(tile_b <= 32))

    # Vectorized distance for the whole tile: one diff/square pass (VPU) and
    # one per-row reduce, then a single scalar accumulator update.
    diff = x_ref[...] - gath_ref[...]
    row_d = jnp.sum(diff * diff, axis=-1, keepdims=True)            # (TB, 1)
    row_d = jnp.clip(row_d, jnp.float32(1e-12), jnp.float32(1e12))
    # Mask padding rows so they contribute exactly 0 (not the 1e-12 floor).
    row_ids = t * tile_b + lax.broadcasted_iota(jnp.int32, (tile_b, 1), 0)
    row_d = jnp.where(row_ids < batch_size, row_d, jnp.float32(0.0))
    acc_ref[0] = acc_ref[0] + jnp.sum(row_d)

    @pl.when(t == pl.num_programs(0) - 1)
    def _finalize():
        # The reference clamps the (C-1) zeroed (unmasked) distmat entries of
        # each row to 1e-12 before summing; that constant floor survives the
        # division by batch_size, so add it back for semantics parity.
        floor = jnp.float32((num_classes - 1) * 1e-12)
        out_ref[0, 0] = acc_ref[0] * jnp.float32(1.0 / batch_size) + floor


def _center_loss_resident(x, centers, labels, *, tile_b, vmem_cap):
    B, D = x.shape
    C, _ = centers.shape

    b_pad = _round_up(B, tile_b)
    x_p = x.astype(jnp.float32)
    labels_p = jnp.clip(labels.astype(jnp.int32).reshape(B), 0, C - 1)
    if b_pad != B:
        x_p = jnp.pad(x_p, ((0, b_pad - B), (0, 0)))
        labels_p = jnp.pad(labels_p, (0, b_pad - B))
    n_tiles = b_pad // tile_b

    kernel = functools.partial(_center_loss_kernel_resident,
                               batch_size=B, num_classes=C, tile_b=tile_b)

    grid_spec = pltpu.PrefetchScalarGridSpec(
        num_scalar_prefetch=1,              # labels -> SMEM
        grid=(n_tiles,),
        in_specs=[
            # x tile t: (TB, D), TB multiple of 8, full D -> (8,128) rule OK.
            pl.BlockSpec((tile_b, D), lambda t, lbl: (t, 0)),
            # Full centers table; constant block index -> DMA'd once, resident.
            pl.BlockSpec((C, D), lambda t, lbl: (0, 0)),
        ],
        # Scalar result on the cheap SMEM store path (no padded VMEM tile).
        out_specs=pl.BlockSpec(memory_space=pltpu.MemorySpace.SMEM),
        scratch_shapes=[
            pltpu.SMEM((1,), jnp.float32),           # batch-sum accumulator
            pltpu.VMEM((tile_b, D), jnp.float32),    # gathered centers rows
        ],
    )

    centers_bytes = C * D * 4
    tile_bytes = tile_b * D * 4
    # 2x centers (BlockSpec inputs are double-buffered even with a constant
    # block index) + 2 x-tile buffers + gather scratch + margin.
    vmem_needed = 2 * centers_bytes + 3 * tile_bytes + (2 << 20)

    params = {"dimension_semantics": ("arbitrary",)}  # sequential reduction
    if vmem_needed > (16 << 20):
        # Only raise the scoped-VMEM limit when we actually need more than the
        # most conservative default; cap well below physical (v7x = 64 MiB).
        params["vmem_limit_bytes"] = int(min(vmem_needed + (4 << 20),
                                             vmem_cap // 2))

    out = pl.pallas_call(
        kernel,
        out_shape=jax.ShapeDtypeStruct((1, 1), jnp.float32),
        grid_spec=grid_spec,
        compiler_params=pltpu.CompilerParams(**params),
        cost_estimate=pl.CostEstimate(
            flops=3 * B * D,
            transcendentals=0,
            bytes_accessed=(b_pad * D + C * D) * 4 + b_pad * 4 + 4,
        ),
    )(labels_p, x_p, centers.astype(jnp.float32))
    return out[0, 0]


# ----------------------------------------------------------------------------
# Fallback path (centers table does not fit the VMEM budget): one batch row per
# grid step with a data-dependent BlockSpec gather of the labeled center row.
# ----------------------------------------------------------------------------
def _center_loss_kernel_rowgather(labels_ref, x_ref, c_ref, out_ref, acc_ref, *,
                                  batch_size, num_classes):
    del labels_ref  # consumed by the index_maps only
    i = pl.program_id(0)

    @pl.when(i == 0)
    def _init():
        acc_ref[0] = jnp.float32(0.0)

    diff = x_ref[...] - c_ref[...]
    d = jnp.sum(diff * diff)
    d = jnp.clip(d, jnp.float32(1e-12), jnp.float32(1e12))
    acc_ref[0] = acc_ref[0] + d

    @pl.when(i == batch_size - 1)
    def _finalize():
        floor = jnp.float32((num_classes - 1) * 1e-12)
        out_ref[0, 0] = acc_ref[0] * jnp.float32(1.0 / batch_size) + floor


def _center_loss_rowgather(x, centers, labels):
    B, D = x.shape
    C, _ = centers.shape
    x3 = x.astype(jnp.float32).reshape(B, 1, D)
    c3 = centers.astype(jnp.float32).reshape(C, 1, D)
    labels_i32 = jnp.clip(labels.astype(jnp.int32).reshape(B), 0, C - 1)

    kernel = functools.partial(_center_loss_kernel_rowgather,
                               batch_size=B, num_classes=C)

    grid_spec = pltpu.PrefetchScalarGridSpec(
        num_scalar_prefetch=1,
        grid=(B,),
        in_specs=[
            pl.BlockSpec((1, 1, D), lambda i, lbl: (i, 0, 0)),
            # Deeper buffering: the gather DMA is tiny and data-dependent.
            pl.BlockSpec((1, 1, D), lambda i, lbl: (lbl[i], 0, 0),
                         pipeline_mode=pl.Buffered(3)),
        ],
        out_specs=pl.BlockSpec(memory_space=pltpu.MemorySpace.SMEM),
        scratch_shapes=[pltpu.SMEM((1,), jnp.float32)],
    )

    out = pl.pallas_call(
        kernel,
        out_shape=jax.ShapeDtypeStruct((1, 1), jnp.float32),
        grid_spec=grid_spec,
        compiler_params=pltpu.CompilerParams(
            dimension_semantics=("arbitrary",)),
        cost_estimate=pl.CostEstimate(
            flops=3 * B * D,
            transcendentals=0,
            bytes_accessed=(2 * B * D) * 4 + B * 4 + 4,
        ),
    )(labels_i32, x3, c3)
    return out[0, 0]


# ----------------------------------------------------------------------------
# Public entry point.
# ----------------------------------------------------------------------------
def center_loss(x, centers, labels):
    """x: (B, D) f32, centers: (C, D) f32, labels: (B,) int -> scalar f32."""
    B, D = x.shape
    C, _ = centers.shape

    try:
        vmem_cap = int(pltpu.get_tpu_info().vmem_capacity_bytes)
    except Exception:
        vmem_cap = 64 << 20  # conservative: v7x physical VMEM per TensorCore

    # Batch tile: big enough to fill sublanes / amortize per-step overhead,
    # shrunk for very large feat_dim so the x tiles stay modest in VMEM.
    tile_b = min(_round_up(B, 8), 256)
    while tile_b > 8 and 3 * tile_b * D * 4 > (8 << 20):
        tile_b //= 2

    centers_budget = vmem_cap // 3  # ~21 MiB on v7x, ~42 MiB on v5e/v6e
    resident_vmem = 2 * C * D * 4 + 3 * tile_b * D * 4
    if resident_vmem <= centers_budget:
        return _center_loss_resident(x, centers, labels,
                                     tile_b=tile_b, vmem_cap=vmem_cap)
    return _center_loss_rowgather(x, centers, labels)


def _reference(x, centers, labels):
    # Mirrors the PyTorch forward (weights=None path), including the clamp of
    # the zeroed unmasked entries of distmat.
    B = x.shape[0]
    C = centers.shape[0]
    distmat = (
        jnp.sum(x**2, axis=1, keepdims=True)
        + jnp.sum(centers**2, axis=1, keepdims=True).T
        - 2.0 * x @ centers.T
    )
    mask = labels[:, None] == jnp.arange(C)[None, :]
    dist = jnp.clip(jnp.where(mask, distmat, 0.0), 1e-12, 1e12)
    return jnp.sum(dist) / B


if __name__ == "__main__":
    # Small, TPU-friendly shapes consistent with the module's forward:
    # batch=8, feat_dim=256, num_classes=128.
    B, D, C = 8, 256, 128

    key = jax.random.PRNGKey(0)
    kx, kc, kl = jax.random.split(key, 3)

    x = jax.random.normal(kx, (B, D), dtype=jnp.float32)
    centers = jax.random.normal(kc, (C, D), dtype=jnp.float32)
    labels = jax.random.randint(kl, (B,), 0, C, dtype=jnp.int32)

    loss = jax.block_until_ready(center_loss(x, centers, labels))

    ref = _reference(x, centers, labels)
    assert jnp.allclose(loss, ref, rtol=1e-5, atol=1e-4), (loss, ref)

    print("KERNEL_OK")
</pallas_src>

<mosaic_0001>
module attributes {stable_mosaic.version = 11 : i64} {
  func.func @_center_loss_kernel_resident(%arg0: i32, %arg1: memref<8xi32, #tpu.memory_space<smem>>, %arg2: memref<8x256xf32, #tpu.memory_space<vmem>>, %arg3: memref<128x256xf32, #tpu.memory_space<vmem>>, %arg4: memref<1x1xf32, #tpu.memory_space<smem>>, %arg5: memref<1xf32, #tpu.memory_space<smem>>, %arg6: memref<8x256xf32, #tpu.memory_space<vmem>>) attributes {dimension_semantics = [#tpu.dimension_semantics<arbitrary>], iteration_bounds = array<i64: 1>, scalar_prefetch = 1 : i64, scratch_operands = 2 : i64, tpu.core_type = #tpu.core_type<tc>, window_params = [{transform_indices = @transform_0, window_bounds = array<i64: 8, 256>}, {pipeline_mode = #tpu.pipeline_mode<synchronous>, transform_indices = @transform_1, window_bounds = array<i64: 128, 256>}, {transform_indices = @transform_2, window_bounds = array<i64: 1, 1>}]} {
    %c0_i32 = arith.constant 0 : i32
    %0 = arith.cmpi eq, %arg0, %c0_i32 : i32
    %1 = arith.extui %0 : i1 to i32
    %c0_i32_0 = arith.constant 0 : i32
    %2 = arith.cmpi ne, %1, %c0_i32_0 : i32
    scf.if %2 {
      %cst_39 = arith.constant 0.000000e+00 : f32
      %c0_40 = arith.constant 0 : index
      %95 = memref.load %arg5[%c0_40] : memref<1xf32, #tpu.memory_space<smem>>
      memref.store %cst_39, %arg5[%c0_40] : memref<1xf32, #tpu.memory_space<smem>>
    } else {
    }
    %c0_i32_1 = arith.constant 0 : i32
    %c8_i32 = arith.constant 8 : i32
    %3 = arith.muli %arg0, %c8_i32 : i32
    %4 = arith.addi %3, %c0_i32_1 : i32
    %5 = arith.index_cast %4 : i32 to index
    %6 = memref.load %arg1[%5] : memref<8xi32, #tpu.memory_space<smem>>
    %7 = arith.index_cast %6 : i32 to index
    %c0 = arith.constant 0 : index
    %8 = vector.load %arg3[%7, %c0] : memref<128x256xf32, #tpu.memory_space<vmem>>, vector<1x256xf32>
    %9 = arith.index_cast %c0_i32_1 : i32 to index
    %c0_2 = arith.constant 0 : index
    %10 = vector.load %arg6[%9, %c0_2] : memref<8x256xf32, #tpu.memory_space<vmem>>, vector<1x256xf32>
    tpu.vector_store %arg6[%9, %c0_2], %8 {strides = array<i32>} : memref<8x256xf32, #tpu.memory_space<vmem>>, vector<1x256xf32>,
    %c1_i32 = arith.constant 1 : i32
    %c8_i32_3 = arith.constant 8 : i32
    %11 = arith.muli %arg0, %c8_i32_3 : i32
    %12 = arith.addi %11, %c1_i32 : i32
    %13 = arith.index_cast %12 : i32 to index
    %14 = memref.load %arg1[%13] : memref<8xi32, #tpu.memory_space<smem>>
    %15 = arith.index_cast %14 : i32 to index
    %c0_4 = arith.constant 0 : index
    %16 = vector.load %arg3[%15, %c0_4] : memref<128x256xf32, #tpu.memory_space<vmem>>, vector<1x256xf32>
    %17 = arith.index_cast %c1_i32 : i32 to index
    %c0_5 = arith.constant 0 : index
    %18 = vector.load %arg6[%17, %c0_5] : memref<8x256xf32, #tpu.memory_space<vmem>>, vector<1x256xf32>
    tpu.vector_store %arg6[%17, %c0_5], %16 {strides = array<i32>} : memref<8x256xf32, #tpu.memory_space<vmem>>, vector<1x256xf32>,
    %c2_i32 = arith.constant 2 : i32
    %c8_i32_6 = arith.constant 8 : i32
    %19 = arith.muli %arg0, %c8_i32_6 : i32
    %20 = arith.addi %19, %c2_i32 : i32
    %21 = arith.index_cast %20 : i32 to index
    %22 = memref.load %arg1[%21] : memref<8xi32, #tpu.memory_space<smem>>
    %23 = arith.index_cast %22 : i32 to index
    %c0_7 = arith.constant 0 : index
    %24 = vector.load %arg3[%23, %c0_7] : memref<128x256xf32, #tpu.memory_space<vmem>>, vector<1x256xf32>
    %25 = arith.index_cast %c2_i32 : i32 to index
    %c0_8 = arith.constant 0 : index
    %26 = vector.load %arg6[%25, %c0_8] : memref<8x256xf32, #tpu.memory_space<vmem>>, vector<1x256xf32>
    tpu.vector_store %arg6[%25, %c0_8], %24 {strides = array<i32>} : memref<8x256xf32, #tpu.memory_space<vmem>>, vector<1x256xf32>,
    %c3_i32 = arith.constant 3 : i32
    %c8_i32_9 = arith.constant 8 : i32
    %27 = arith.muli %arg0, %c8_i32_9 : i32
    %28 = arith.addi %27, %c3_i32 : i32
    %29 = arith.index_cast %28 : i32 to index
    %30 = memref.load %arg1[%29] : memref<8xi32, #tpu.memory_space<smem>>
    %31 = arith.index_cast %30 : i32 to index
    %c0_10 = arith.constant 0 : index
    %32 = vector.load %arg3[%31, %c0_10] : memref<128x256xf32, #tpu.memory_space<vmem>>, vector<1x256xf32>
    %33 = arith.index_cast %c3_i32 : i32 to index
    %c0_11 = arith.constant 0 : index
    %34 = vector.load %arg6[%33, %c0_11] : memref<8x256xf32, #tpu.memory_space<vmem>>, vector<1x256xf32>
    tpu.vector_store %arg6[%33, %c0_11], %32 {strides = array<i32>} : memref<8x256xf32, #tpu.memory_space<vmem>>, vector<1x256xf32>,
    %c4_i32 = arith.constant 4 : i32
    %c8_i32_12 = arith.constant 8 : i32
    %35 = arith.muli %arg0, %c8_i32_12 : i32
    %36 = arith.addi %35, %c4_i32 : i32
    %37 = arith.index_cast %36 : i32 to index
    %38 = memref.load %arg1[%37] : memref<8xi32, #tpu.memory_space<smem>>
    %39 = arith.index_cast %38 : i32 to index
    %c0_13 = arith.constant 0 : index
    %40 = vector.load %arg3[%39, %c0_13] : memref<128x256xf32, #tpu.memory_space<vmem>>, vector<1x256xf32>
    %41 = arith.index_cast %c4_i32 : i32 to index
    %c0_14 = arith.constant 0 : index
    %42 = vector.load %arg6[%41, %c0_14] : memref<8x256xf32, #tpu.memory_space<vmem>>, vector<1x256xf32>
    tpu.vector_store %arg6[%41, %c0_14], %40 {strides = array<i32>} : memref<8x256xf32, #tpu.memory_space<vmem>>, vector<1x256xf32>,
    %c5_i32 = arith.constant 5 : i32
    %c8_i32_15 = arith.constant 8 : i32
    %43 = arith.muli %arg0, %c8_i32_15 : i32
    %44 = arith.addi %43, %c5_i32 : i32
    %45 = arith.index_cast %44 : i32 to index
    %46 = memref.load %arg1[%45] : memref<8xi32, #tpu.memory_space<smem>>
    %47 = arith.index_cast %46 : i32 to index
    %c0_16 = arith.constant 0 : index
    %48 = vector.load %arg3[%47, %c0_16] : memref<128x256xf32, #tpu.memory_space<vmem>>, vector<1x256xf32>
    %49 = arith.index_cast %c5_i32 : i32 to index
    %c0_17 = arith.constant 0 : index
    %50 = vector.load %arg6[%49, %c0_17] : memref<8x256xf32, #tpu.memory_space<vmem>>, vector<1x256xf32>
    tpu.vector_store %arg6[%49, %c0_17], %48 {strides = array<i32>} : memref<8x256xf32, #tpu.memory_space<vmem>>, vector<1x256xf32>,
    %c6_i32 = arith.constant 6 : i32
    %c8_i32_18 = arith.constant 8 : i32
    %51 = arith.muli %arg0, %c8_i32_18 : i32
    %52 = arith.addi %51, %c6_i32 : i32
    %53 = arith.index_cast %52 : i32 to index
    %54 = memref.load %arg1[%53] : memref<8xi32, #tpu.memory_space<smem>>
    %55 = arith.index_cast %54 : i32 to index
    %c0_19 = arith.constant 0 : index
    %56 = vector.load %arg3[%55, %c0_19] : memref<128x256xf32, #tpu.memory_space<vmem>>, vector<1x256xf32>
    %57 = arith.index_cast %c6_i32 : i32 to index
    %c0_20 = arith.constant 0 : index
    %58 = vector.load %arg6[%57, %c0_20] : memref<8x256xf32, #tpu.memory_space<vmem>>, vector<1x256xf32>
    tpu.vector_store %arg6[%57, %c0_20], %56 {strides = array<i32>} : memref<8x256xf32, #tpu.memory_space<vmem>>, vector<1x256xf32>,
    %c7_i32 = arith.constant 7 : i32
    %c8_i32_21 = arith.constant 8 : i32
    %59 = arith.muli %arg0, %c8_i32_21 : i32
    %60 = arith.addi %59, %c7_i32 : i32
    %61 = arith.index_cast %60 : i32 to index
    %62 = memref.load %arg1[%61] : memref<8xi32, #tpu.memory_space<smem>>
    %63 = arith.index_cast %62 : i32 to index
    %c0_22 = arith.constant 0 : index
    %64 = vector.load %arg3[%63, %c0_22] : memref<128x256xf32, #tpu.memory_space<vmem>>, vector<1x256xf32>
    %65 = arith.index_cast %c7_i32 : i32 to index
    %c0_23 = arith.constant 0 : index
    %66 = vector.load %arg6[%65, %c0_23] : memref<8x256xf32, #tpu.memory_space<vmem>>, vector<1x256xf32>
    tpu.vector_store %arg6[%65, %c0_23], %64 {strides = array<i32>} : memref<8x256xf32, #tpu.memory_space<vmem>>, vector<1x256xf32>,
    %c8_i32_24 = arith.constant 8 : i32
    %c0_25 = arith.constant 0 : index
    %c0_26 = arith.constant 0 : index
    %67 = vector.load %arg2[%c0_25, %c0_26] : memref<8x256xf32, #tpu.memory_space<vmem>>, vector<8x256xf32>
    %c0_27 = arith.constant 0 : index
    %c0_28 = arith.constant 0 : index
    %68 = vector.load %arg6[%c0_27, %c0_28] : memref<8x256xf32, #tpu.memory_space<vmem>>, vector<8x256xf32>
    %69 = arith.subf %67, %68 : vector<8x256xf32>
    %70 = arith.mulf %69, %69 : vector<8x256xf32>
    %cst = arith.constant dense<0.000000e+00> : vector<8xf32>
    %71 = vector.multi_reduction <add>, %70, %cst [1] : vector<8x256xf32> to vector<8xf32>
    %72 = vector.shape_cast %71 : vector<8xf32> to vector<8x1xf32>
    %cst_29 = arith.constant 9.99999996E-13 : f32
    %cst_30 = arith.constant 9.99999995E+11 : f32
    %73 = vector.broadcast %cst_29 : f32 to vector<8x1xf32>
    %74 = arith.maximumf %73, %72 : vector<8x1xf32>
    %75 = vector.broadcast %cst_30 : f32 to vector<8x1xf32>
    %76 = arith.minimumf %75, %74 : vector<8x1xf32>
    %c8_i32_31 = arith.constant 8 : i32
    %77 = arith.muli %arg0, %c8_i32_31 : i32
    %78 = tpu.iota {dimensions = array<i32: 0>} : vector<8x1xi32>
    %79 = vector.broadcast %77 : i32 to vector<8x1xi32>
    %80 = arith.addi %79, %78 : vector<8x1xi32>
    %c8_i32_32 = arith.constant 8 : i32
    %81 = vector.broadcast %c8_i32_32 : i32 to vector<8x1xi32>
    %82 = arith.cmpi slt, %80, %81 : vector<8x1xi32>
    %cst_33 = arith.constant 0.000000e+00 : f32
    %83 = vector.broadcast %cst_33 : f32 to vector<8x1xf32>
    %84 = arith.select %82, %76, %83 : vector<8x1xi1>, vector<8x1xf32>
    %c0_34 = arith.constant 0 : index
    %85 = memref.load %arg5[%c0_34] : memref<1xf32, #tpu.memory_space<smem>>
    %86 = vector.shape_cast %84 : vector<8x1xf32> to vector<1x8x1xf32>
    %cst_35 = arith.constant dense<0.000000e+00> : vector<1xf32>
    %87 = vector.multi_reduction <add>, %86, %cst_35 [1, 2] : vector<1x8x1xf32> to vector<1xf32>
    %88 = vector.shape_cast %87 : vector<1xf32> to vector<1x1x1xf32>
    %89 = vector.extract %88[0, 0, 0] : f32 from vector<1x1x1xf32>
    %90 = arith.addf %85, %89 : f32
    %c0_36 = arith.constant 0 : index
    %91 = memref.load %arg5[%c0_36] : memref<1xf32, #tpu.memory_space<smem>>
    memref.store %90, %arg5[%c0_36] : memref<1xf32, #tpu.memory_space<smem>>
    %c0_i32_37 = arith.constant 0 : i32
    %92 = arith.cmpi eq, %arg0, %c0_i32_37 : i32
    %93 = arith.extui %92 : i1 to i32
    %c0_i32_38 = arith.constant 0 : i32
    %94 = arith.cmpi ne, %93, %c0_i32_38 : i32
    scf.if %94 {
      %c0_39 = arith.constant 0 : index
      %95 = memref.load %arg5[%c0_39] : memref<1xf32, #tpu.memory_space<smem>>
      %cst_40 = arith.constant 1.250000e-01 : f32
      %96 = arith.mulf %95, %cst_40 : f32
      %cst_41 = arith.constant 1.270000e-10 : f32
      %97 = arith.addf %96, %cst_41 : f32
      %c0_42 = arith.constant 0 : index
      %c0_43 = arith.constant 0 : index
      %98 = memref.load %arg4[%c0_42, %c0_43] : memref<1x1xf32, #tpu.memory_space<smem>>
      memref.store %97, %arg4[%c0_42, %c0_43] : memref<1x1xf32, #tpu.memory_space<smem>>
    } else {
    }
    return
  }
  func.func @transform_0(%arg0: i32, %arg1: memref<8xi32, #tpu.memory_space<smem>>) -> (i32, i32) {
    %c0_i32 = arith.constant 0 : i32
    %c0_i32_0 = arith.constant 0 : i32
    return %arg0, %c0_i32 : i32, i32
  }
  func.func @transform_1(%arg0: i32, %arg1: memref<8xi32, #tpu.memory_space<smem>>) -> (i32, i32) {
    %c0_i32 = arith.constant 0 : i32
    %c0_i32_0 = arith.constant 0 : i32
    %c0_i32_1 = arith.constant 0 : i32
    return %c0_i32, %c0_i32_0 : i32, i32
  }
  func.func @transform_2(%arg0: i32, %arg1: memref<8xi32, #tpu.memory_space<smem>>) -> (i32, i32) {
    %c0_i32 = arith.constant 0 : i32
    %c0_i32_0 = arith.constant 0 : i32
    %c0_i32_1 = arith.constant 0 : i32
    return %c0_i32, %c0_i32_0 : i32, i32
  }
}

</mosaic_0001>

<llo_original>
// kernel: tpu_custom_call.1
$region0: #{tpu_custom_call.1}
  #allocation0 [shape = 'u32[]', space=smem, size = 0x4, offset = 0x4, fixed_abs, tag = 'smem constant byte address 0x4 - core index']
  #allocation1 [shape = 'u32[144,128]{1,0:T(1,128)}', space=vmem, size = 0x12000, scoped, tag = 'internal scratch']
  #allocation2 [shape = 'f32[1]{0:T(128)}', space=smem, size = 0x200, scoped, tag = 'scratch operand']
  #allocation3 [shape = 'f32[8,256]{1,0:T(8,128)}', space=vmem, size = 0x2000, scoped, tag = 'scratch operand']
  #allocation4 [shape = 's32[1]{0}', space=sflag, size = 0x4, scoped, tag = 'scoped memory for tpu_custom_call.1']
  #allocation5 [shape = 'u8[512]{0}', space=smem, size = 0x200, scoped, tag = 'prefetched SMEM operand 0']
  %s0 = inlined_call_operand.hbm [shape: s32[8], index: 0, kind: input, shape index: {}]
  %s1 = inlined_call_operand.hbm [shape: f32[8,256], index: 1, kind: input, shape index: {}]
  %s2 = inlined_call_operand.hbm [shape: f32[128,256], index: 2, kind: input, shape index: {}]
  %s3 = inlined_call_operand.hbm [shape: f32[1,1], index: 3, kind: output, shape index: {}]
  %s4 = sld [smem:[#allocation0]]
  $region34: #{tpu_custom_call.1} parent=0
    _
  %s6 = ssub.s32 1, %s4
  %s7 = scalar_select 0, %s6, %s4
  %9 = dma.hbm_to_smem %s0, 16, [#allocation5], [#allocation4]
  %10 = dma.done [#allocation4], 16
  %11 = sfence
  $region1: #{tpu_custom_call.1} parent=0
    #allocation6 [shape = 'u8[8192]{0}', space=vmem, size = 0x2000, scoped, tag = 'input window, operand 1, single buffered']
    #allocation7 [shape = 's32[1]{0}', space=sflag, size = 0x4, scoped, tag = 'scoped memory for tpu_custom_call.1']
    #allocation8 [shape = 's32[1]{0}', space=sflag, size = 0x4, scoped, tag = 'scoped memory for tpu_custom_call.1']
    #allocation9 [shape = 'u8[131072]{0}', space=vmem, size = 0x20000, scoped, tag = 'input window, operand 2, single buffered']
    #allocation10 [shape = 's32[1]{0}', space=sflag, size = 0x4, scoped, tag = 'scoped memory for tpu_custom_call.1']
    #allocation11 [shape = 'u8[512]{0}', space=smem, size = 0x200, scoped, tag = 'output window, operand 0, single buffered']
    %12 = vsyncpa [#allocation7], 0
    %13 = vsyncpa [#allocation10], 0
    %14 = vsyncpa [#allocation8], 0
    // Predicated region
    $region2: #{tpu_custom_call.1} parent=1 // pred_check
      _
    $region3: #{tpu_custom_call.1} parent=1 // pred_check_branch
      %16 = sbr.rel (0) target = $region5
    $region4: #{tpu_custom_call.1} parent=1 // pred_region
      %s18 = ssub.s32 256, 256
      %19 = vsyncadd [#allocation7], %s18
      %s21 = sshll.u32 [#allocation6], 4
      %s22 = int_to_ptr.vmem [resolvable:$true] %s21
      %24 = dma.hbm_to_vmem [thread:$0]  %s1, 256, %s22, [#allocation7]
    $region5: #{tpu_custom_call.1} parent=1 // pred_fallthru
      _
    // Predicated region
    $region6: #{tpu_custom_call.1} parent=1 // pred_check
      _
    $region7: #{tpu_custom_call.1} parent=1 // pred_check_branch
      %26 = sbr.rel (0) target = $region9
    $region8: #{tpu_custom_call.1} parent=1 // pred_region
      %s28 = ssub.s32 4096, 4096
      %29 = vsyncadd [#allocation10], %s28
      %s30 = sshll.u32 [#allocation9], 4
      %s31 = int_to_ptr.vmem [resolvable:$true] %s30
      %36 = dma.hbm_to_vmem [thread:$0]  %s2, 4096, %s31, [#allocation10], 256, 256, 16
    $region9: #{tpu_custom_call.1} parent=1 // pred_fallthru
      _
    // Predicated region
    $region10: #{tpu_custom_call.1} parent=1 // pred_check
      _
    $region11: #{tpu_custom_call.1} parent=1 // pred_check_branch
      %38 = sbr.rel (0) target = $region13
    $region12: #{tpu_custom_call.1} parent=1 // pred_region
      %39 = dma.done [#allocation7], 256
    $region13: #{tpu_custom_call.1} parent=1 // pred_fallthru
      _
    // Predicated region
    $region14: #{tpu_custom_call.1} parent=1 // pred_check
      _
    $region15: #{tpu_custom_call.1} parent=1 // pred_check_branch
      %41 = sbr.rel (0) target = $region17
    $region16: #{tpu_custom_call.1} parent=1 // pred_region
      %42 = dma.done [#allocation10], 4096
    $region17: #{tpu_custom_call.1} parent=1 // pred_fallthru
      _
    %p43 = scmp.eq.s32.totalorder 0, 0
    // Predicated region
    $region18: #{tpu_custom_call.1} parent=1 // pred_check
      %p44 = pneg %p43
    $region19: #{tpu_custom_call.1} parent=1 // pred_check_branch
      %46 = sbr.rel (%p44) target = $region21
    $region20: #{tpu_custom_call.1} parent=1 // pred_region
      %s47 = scalar_lea.smem [#allocation2], 0
      %48 = sst [smem:[%s47]] 0.0
    $region21: #{tpu_custom_call.1} parent=1 // pred_fallthru
      _
    %s49 = smul.u32 0, 8
    %s50 = sld [smem:[#allocation5 + %s49]]
    %s51 = sshra.s32 %s50, 3
    %s52 = sand.u32 %s50, 7
    %s53 = sshra.s32 %s50, 3
    %s54 = sand.u32 %s50, 7
    %s55 = smul.u32 %s51, 2
    %s56 = smul.u32 %s55, 8
    %s57 = sadd.s32 %s56, %s54
    %s58 = scalar_lea.vmem [#allocation9], %s57
    %v59 = vld [vmem:[%s58] ss:$8 sm:$0x3]
    %v60 = vlaneseq
    %vm61 = vcmp.ge.s32.totalorder %v60, 0
    %vm62 = vcmp.lt.s32.totalorder %v60, 256
    %vm63 = vmand %vm61, %vm62
    %64 = vst.msk [vmem:[#allocation3] ss:$8 sm:$0x3] %vm63, %v59
    %65 = vst.msk [vmem:[#allocation3] ss:$8 sm:$0x0] %vm63, %v59
    %s66 = sadd.s32 %s49, 1
    %s67 = sld [smem:[#allocation5 + %s66]]
    %s68 = sshra.s32 %s67, 3
    %s69 = sand.u32 %s67, 7
    %s70 = sshra.s32 %s67, 3
    %s71 = sand.u32 %s67, 7
    %s72 = smul.u32 %s68, 2
    %s73 = smul.u32 %s72, 8
    %s74 = sadd.s32 %s73, %s71
    %s75 = scalar_lea.vmem [#allocation9], %s74
    %v76 = vld [vmem:[%s75] ss:$8 sm:$0x3]
    %s77 = scalar_lea.vmem [#allocation3], 1
    %78 = vst.msk [vmem:[%s77] ss:$8 sm:$0x3] %vm63, %v76
    %79 = vst.msk [vmem:[%s77] ss:$8 sm:$0x0] %vm63, %v76
    %s80 = sadd.s32 %s49, 2
    %s81 = sld [smem:[#allocation5 + %s80]]
    %s82 = sshra.s32 %s81, 3
    %s83 = sand.u32 %s81, 7
    %s84 = sshra.s32 %s81, 3
    %s85 = sand.u32 %s81, 7
    %s86 = smul.u32 %s82, 2
    %s87 = smul.u32 %s86, 8
    %s88 = sadd.s32 %s87, %s85
    %s89 = scalar_lea.vmem [#allocation9], %s88
    %v90 = vld [vmem:[%s89] ss:$8 sm:$0x3]
    %s91 = scalar_lea.vmem [#allocation3], 2
    %92 = vst.msk [vmem:[%s91] ss:$8 sm:$0x3] %vm63, %v90
    %93 = vst.msk [vmem:[%s91] ss:$8 sm:$0x0] %vm63, %v90
    %s94 = sadd.s32 %s49, 3
    %s95 = sld [smem:[#allocation5 + %s94]]
    %s96 = sshra.s32 %s95, 3
    %s97 = sand.u32 %s95, 7
    %s98 = sshra.s32 %s95, 3
    %s99 = sand.u32 %s95, 7
    %s100 = smul.u32 %s96, 2
    %s101 = smul.u32 %s100, 8
    %s102 = sadd.s32 %s101, %s99
    %s103 = scalar_lea.vmem [#allocation9], %s102
    %v104 = vld [vmem:[%s103] ss:$8 sm:$0x3]
    %s105 = scalar_lea.vmem [#allocation3], 3
    %106 = vst.msk [vmem:[%s105] ss:$8 sm:$0x3] %vm63, %v104
    %107 = vst.msk [vmem:[%s105] ss:$8 sm:$0x0] %vm63, %v104
    %s108 = sadd.s32 %s49, 4
    %s109 = sld [smem:[#allocation5 + %s108]]
    %s110 = sshra.s32 %s109, 3
    %s111 = sand.u32 %s109, 7
    %s112 = sshra.s32 %s109, 3
    %s113 = sand.u32 %s109, 7
    %s114 = smul.u32 %s110, 2
    %s115 = smul.u32 %s114, 8
    %s116 = sadd.s32 %s115, %s113
    %s117 = scalar_lea.vmem [#allocation9], %s116
    %v118 = vld [vmem:[%s117] ss:$8 sm:$0x3]
    %s119 = scalar_lea.vmem [#allocation3], 4
    %120 = vst.msk [vmem:[%s119] ss:$8 sm:$0x3] %vm63, %v118
    %121 = vst.msk [vmem:[%s119] ss:$8 sm:$0x0] %vm63, %v118
    %s122 = sadd.s32 %s49, 5
    %s123 = sld [smem:[#allocation5 + %s122]]
    %s124 = sshra.s32 %s123, 3
    %s125 = sand.u32 %s123, 7
    %s126 = sshra.s32 %s123, 3
    %s127 = sand.u32 %s123, 7
    %s128 = smul.u32 %s124, 2
    %s129 = smul.u32 %s128, 8
    %s130 = sadd.s32 %s129, %s127
    %s131 = scalar_lea.vmem [#allocation9], %s130
    %v132 = vld [vmem:[%s131] ss:$8 sm:$0x3]
    %s133 = scalar_lea.vmem [#allocation3], 5
    %134 = vst.msk [vmem:[%s133] ss:$8 sm:$0x3] %vm63, %v132
    %135 = vst.msk [vmem:[%s133] ss:$8 sm:$0x0] %vm63, %v132
    %s136 = sadd.s32 %s49, 6
    %s137 = sld [smem:[#allocation5 + %s136]]
    %s138 = sshra.s32 %s137, 3
    %s139 = sand.u32 %s137, 7
    %s140 = sshra.s32 %s137, 3
    %s141 = sand.u32 %s137, 7
    %s142 = smul.u32 %s138, 2
    %s143 = smul.u32 %s142, 8
    %s144 = sadd.s32 %s143, %s141
    %s145 = scalar_lea.vmem [#allocation9], %s144
    %v146 = vld [vmem:[%s145] ss:$8 sm:$0x3]
    %s147 = scalar_lea.vmem [#allocation3], 6
    %148 = vst.msk [vmem:[%s147] ss:$8 sm:$0x3] %vm63, %v146
    %149 = vst.msk [vmem:[%s147] ss:$8 sm:$0x0] %vm63, %v146
    %s150 = sadd.s32 %s49, 7
    %s151 = sld [smem:[#allocation5 + %s150]]
    %s152 = sshra.s32 %s151, 3
    %s153 = sand.u32 %s151, 7
    %s154 = sshra.s32 %s151, 3
    %s155 = sand.u32 %s151, 7
    %s156 = smul.u32 %s152, 2
    %s157 = smul.u32 %s156, 8
    %s158 = sadd.s32 %s157, %s155
    %s159 = scalar_lea.vmem [#allocation9], %s158
    %v160 = vld [vmem:[%s159] ss:$8 sm:$0x3]
    %s161 = scalar_lea.vmem [#allocation3], 7
    %162 = vst.msk [vmem:[%s161] ss:$8 sm:$0x3] %vm63, %v160
    %163 = vst.msk [vmem:[%s161] ss:$8 sm:$0x0] %vm63, %v160
    %v164 = vld [vmem:[#allocation6] sm:$0xff]
    %v165 = vld [vmem:[#allocation6 + $0x8] sm:$0xff]
    %v166 = vld [vmem:[#allocation3] sm:$0xff]
    %v167 = vld [vmem:[#allocation3 + $0x8] sm:$0xff]
    %v168 = vsub.f32 %v164, %v166
    %v169 = vsub.f32 %v165, %v167
    %v170 = vmul.f32 %v168, %v168
    %v171 = vmul.f32 %v169, %v169
    %v172 = vadd.f32 %v170, %v171
    %173 = vadd.xlane.f32.xlu0 %v172
    %v174 = vpop.xlane.xlu0 %173
    %v175 = vmax.f32 %v174, 1e-12
    %v176 = vmin.f32 %v175, 1e+12
    %v177 = vlaneseq
    %v178 = vshrl.u32 %v177, 7
    %v179 = vstv %s49
    %v180 = vadd.s32 %v179, %v178
    %vm181 = vcmp.lt.s32.totalorder %v180, 8
    %v182 = vsel %vm181, %v176, 0.0
    %s183 = sld [smem:[#allocation2]]
    %vm184 = vcmask 7168
    %v185 = vsel %vm184, %v182, 0.0
    %186 = vadd.xlane.f32.xlu0 %v185
    %v187 = vpop.xlane.xlu0 %186
    %v188 = vrot.slane %v187, 4
    %v189 = vadd.f32 %v187, %v188
    %v190 = vrot.slane %v189, 2
    %v191 = vadd.f32 %v189, %v190
    %v192 = vrot.slane %v191, 1
    %v193 = vadd.f32 %v191, %v192
    %s194 = vtos %v193
    %s195 = sadd.f32 %s183, %s194
    %s196 = scalar_lea.smem [#allocation2], 0
    %197 = sst [smem:[%s196]] %s195
    // Predicated region
    $region22: #{tpu_custom_call.1} parent=1 // pred_check
      %p198 = pneg %p43
    $region23: #{tpu_custom_call.1} parent=1 // pred_check_branch
      %200 = sbr.rel (%p198) target = $region25
    $region24: #{tpu_custom_call.1} parent=1 // pred_region
      %s201 = sld [smem:[#allocation2]]
      %s202 = smul.f32 %s201, 0.125
      %s203 = sadd.f32 %s202, 1.27e-10
      %s204 = scalar_lea.smem [#allocation11], 0
      %205 = sst [smem:[%s204]] %s203
    $region25: #{tpu_custom_call.1} parent=1 // pred_fallthru
      _
    // Predicated region
    $region26: #{tpu_custom_call.1} parent=1 // pred_check
      _
    $region27: #{tpu_custom_call.1} parent=1 // pred_check_branch
      %207 = sbr.rel (0) target = $region29
    $region28: #{tpu_custom_call.1} parent=1 // pred_region
      %s209 = ssub.s32 16, 16
      %210 = vsyncadd [#allocation8], %s209
      %213 = dma.smem_to_hbm [#allocation11], 16, %s3, [#allocation8]
    $region29: #{tpu_custom_call.1} parent=1 // pred_fallthru
      _
    // Predicated region
    $region30: #{tpu_custom_call.1} parent=1 // pred_check
      _
    $region31: #{tpu_custom_call.1} parent=1 // pred_check_branch
      %215 = sbr.rel (0) target = $region33
    $region32: #{tpu_custom_call.1} parent=1 // pred_region
      %216 = dma.done [#allocation8], 16
    $region33: #{tpu_custom_call.1} parent=1 // pred_fallthru
      _
    %217 = sfence
    %218 = vsyncpa [#allocation7], 1
    %219 = vsyncpa [#allocation10], 1
    %220 = vsyncpa [#allocation8], 1

</llo_original>
